<compile_context>
chip_gen: v6e
topology: v6e:2x2x1
jax: 0.10.0
libtpu: 0.0.40
codegen_flags: <defaults>
</compile_context>

<pallas_src>
import jax
import jax.numpy as jnp
from jax.experimental import pallas as pl
from jax.experimental.pallas import tpu as pltpu


# ------------------------------ kernels ------------------------------

def _gated_silu_kernel_split(a_ref, b_ref, o_ref):
    """Lane-aligned path: a_ref, b_ref, o_ref are (tm, D) tiles."""
    a = a_ref[...].astype(jnp.float32)
    b = b_ref[...].astype(jnp.float32)
    # SiLU(b) = b * sigmoid(b); exp goes to the EUP slot (free vs VALU).
    o_ref[...] = (a * (b * jax.nn.sigmoid(b))).astype(o_ref.dtype)


def _gated_silu_kernel_fused(x_ref, o_ref):
    """Fallback path: x_ref is (tm, 2D) (full-width block), o_ref is (tm, D)."""
    d = o_ref.shape[-1]
    a = x_ref[:, :d].astype(jnp.float32)
    b = x_ref[:, d:].astype(jnp.float32)
    o_ref[...] = (a * (b * jax.nn.sigmoid(b))).astype(o_ref.dtype)


# ------------------------------ wrapper ------------------------------

# Pipeline-buffer budget: 2x (tm, 2D) input + 2x (tm, D) output = 6*tm*D*bytes.
# 24 MiB keeps comfortable headroom on v7x (64 MiB physical VMEM).
_PIPE_BUDGET_BYTES = 24 * 1024 * 1024
# Scoped VMEM limit: above v5e's 16 MiB / v6e-v7x's 32 MiB defaults, well below
# v7x's 64 MiB physical ceiling.
_VMEM_LIMIT_BYTES = 48 * 1024 * 1024


def _choose_tm(m: int, d: int, itemsize: int) -> int:
    """Row tile sized to the VMEM budget; keep the grid multi-step (megacore)."""
    bytes_per_row = 6 * d * itemsize
    tm = _PIPE_BUDGET_BYTES // max(bytes_per_row, 1)
    tm = max(8, min(1024, (tm // 8) * 8))        # multiple of 8, capped at 1024
    m8 = -(-m // 8) * 8
    tm = min(tm, m8)
    # Ensure several grid steps so both TensorCores get fed on v7x (when m allows).
    while tm > 8 and -(-m // tm) < 4:
        tm = max(8, ((tm // 2) // 8) * 8)
    return tm


@jax.jit
def gated_silu(x: jax.Array) -> jax.Array:
    """Gated(SiLU) forward: a, b = split(x, 2, axis=-1); out = a * silu(b)."""
    assert x.shape[-1] % 2 == 0, "last dim must be even"
    two_d = x.shape[-1]
    d = two_d // 2
    lead = x.shape[:-1]

    m = 1
    for s in lead:
        m *= s
    x2 = x.reshape(m, two_d)

    tm = _choose_tm(m, d, jnp.dtype(x.dtype).itemsize)
    grid = (pl.cdiv(m, tm),)          # ragged last block handled by Pallas
    out_shape = jax.ShapeDtypeStruct((m, d), x.dtype)
    compiler_params = pltpu.CompilerParams(
        dimension_semantics=("parallel",),
        vmem_limit_bytes=_VMEM_LIMIT_BYTES,
    )

    if d % 128 == 0:
        # Two lane-aligned (tm, D) blocks of the same array: block index 0 / 1
        # along the feature axis select the a / b halves.
        out = pl.pallas_call(
            _gated_silu_kernel_split,
            out_shape=out_shape,
            grid_spec=pltpu.PrefetchScalarGridSpec(
                num_scalar_prefetch=0,
                grid=grid,
                in_specs=[
                    pl.BlockSpec((tm, d), lambda i: (i, 0)),   # a = x[:, :d]
                    pl.BlockSpec((tm, d), lambda i: (i, 1)),   # b = x[:, d:]
                ],
                out_specs=pl.BlockSpec((tm, d), lambda i: (i, 0)),
            ),
            compiler_params=compiler_params,
        )(x2, x2)
    else:
        # Full-width block (2D == full last dim, so no lane-divisibility issue).
        out = pl.pallas_call(
            _gated_silu_kernel_fused,
            out_shape=out_shape,
            grid_spec=pltpu.PrefetchScalarGridSpec(
                num_scalar_prefetch=0,
                grid=grid,
                in_specs=[pl.BlockSpec((tm, two_d), lambda i: (i, 0))],
                out_specs=pl.BlockSpec((tm, d), lambda i: (i, 0)),
            ),
            compiler_params=compiler_params,
        )(x2)

    return out.reshape(*lead, d)


def gated_silu_ref(x: jax.Array) -> jax.Array:
    """Pure-JAX reference matching the torch semantics."""
    d = x.shape[-1] // 2
    a, b = x[..., :d], x[..., d:]
    return a * jax.nn.silu(b)


if __name__ == "__main__":
    key = jax.random.PRNGKey(0)

    # 1) Small shape consistent with the module (exercises the fallback path,
    #    D=32 is not lane-aligned): batch=2, seq=8, hidden=64 -> out hidden=32.
    k1, k2 = jax.random.split(key)
    x_small = jax.random.normal(k1, (2, 8, 64), dtype=jnp.float32)
    out_small = gated_silu(x_small)
    jax.block_until_ready(out_small)
    ref_small = gated_silu_ref(x_small)
    assert out_small.shape == (2, 8, 32), out_small.shape
    assert jnp.allclose(out_small, ref_small, atol=1e-5, rtol=1e-5), "mismatch (fallback path)"

    # 2) Lane-aligned shape (exercises the split two-block path, D=128), with a
    #    row count that is NOT a multiple of the tile to check the ragged grid.
    x_aligned = jax.random.normal(k2, (3, 7, 256), dtype=jnp.float32)
    out_aligned = gated_silu(x_aligned)
    jax.block_until_ready(out_aligned)
    ref_aligned = gated_silu_ref(x_aligned)
    assert out_aligned.shape == (3, 7, 128), out_aligned.shape
    assert jnp.allclose(out_aligned, ref_aligned, atol=1e-5, rtol=1e-5), "mismatch (split path)"

    print("KERNEL_OK")
</pallas_src>

<mosaic_0001>
module attributes {stable_mosaic.version = 11 : i64} {
  func.func @_gated_silu_kernel_fused(%arg0: i32, %arg1: memref<8x64xf32, #tpu.memory_space<vmem>>, %arg2: memref<8x32xf32, #tpu.memory_space<vmem>>) attributes {dimension_semantics = [#tpu.dimension_semantics<parallel>], iteration_bounds = array<i64: 2>, scalar_prefetch = 0 : i64, scratch_operands = 0 : i64, tpu.core_type = #tpu.core_type<tc>, window_params = [{transform_indices = @transform_0, window_bounds = array<i64: 8, 64>}, {transform_indices = @transform_1, window_bounds = array<i64: 8, 32>}]} {
    %c0 = arith.constant 0 : index
    %c0_0 = arith.constant 0 : index
    %0 = vector.load %arg1[%c0, %c0_0] : memref<8x64xf32, #tpu.memory_space<vmem>>, vector<8x32xf32>
    %c0_1 = arith.constant 0 : index
    %c32 = arith.constant 32 : index
    %1 = vector.load %arg1[%c0_1, %c32] : memref<8x64xf32, #tpu.memory_space<vmem>>, vector<8x32xf32>
    %2 = arith.negf %1 : vector<8x32xf32>
    %3 = math.exp %2 : vector<8x32xf32>
    %cst = arith.constant 1.000000e+00 : f32
    %4 = vector.broadcast %cst : f32 to vector<8x32xf32>
    %5 = arith.addf %4, %3 : vector<8x32xf32>
    %6 = arith.divf %4, %5 : vector<8x32xf32>
    %7 = arith.mulf %1, %6 : vector<8x32xf32>
    %8 = arith.mulf %0, %7 : vector<8x32xf32>
    %c0_2 = arith.constant 0 : index
    %c0_3 = arith.constant 0 : index
    %9 = vector.load %arg2[%c0_2, %c0_3] : memref<8x32xf32, #tpu.memory_space<vmem>>, vector<8x32xf32>
    tpu.vector_store %arg2[%c0_2, %c0_3], %8 {strides = array<i32>} : memref<8x32xf32, #tpu.memory_space<vmem>>, vector<8x32xf32>,
    return
  }
  func.func @transform_0(%arg0: i32) -> (i32, i32) {
    %c0_i32 = arith.constant 0 : i32
    %c0_i32_0 = arith.constant 0 : i32
    return %arg0, %c0_i32 : i32, i32
  }
  func.func @transform_1(%arg0: i32) -> (i32, i32) {
    %c0_i32 = arith.constant 0 : i32
    %c0_i32_0 = arith.constant 0 : i32
    return %arg0, %c0_i32 : i32, i32
  }
}

</mosaic_0001>

<llo_original>
// kernel: gated_silu.1
$region0: #{gated_silu.1}
  #allocation0 [shape = 'u32[]', space=smem, size = 0x4, offset = 0x4, fixed_abs, tag = 'smem constant byte address 0x4 - core index']
  #allocation1 [shape = 'u32[144,128]{1,0:T(1,128)}', space=vmem, size = 0x12000, scoped, tag = 'internal scratch']
  %s0 = inlined_call_operand.hbm [shape: f32[16,64], index: 0, kind: input, shape index: {}]
  %s1 = inlined_call_operand.hbm [shape: f32[16,32], index: 1, kind: output, shape index: {}]
  %s2 = sld [smem:[#allocation0]]
  $region41: #{gated_silu.1} parent=0
    _
  %s4 = ssub.s32 1, %s2
  %s5 = scalar_select 0, %s4, %s2
  $region1: #{gated_silu.1} parent=0
    #allocation2 [shape = 'u8[8192]{0}', space=vmem, size = 0x2000, scoped, tag = 'input window, operand 0']
    #allocation3 [shape = 's32[2]{0}', space=sflag, size = 0x8, scoped, tag = 'scoped memory for gated_silu.1']
    #allocation4 [shape = 's32[2]{0}', space=sflag, size = 0x8, scoped, tag = 'scoped memory for gated_silu.1']
    #allocation5 [shape = 'u8[8192]{0}', space=vmem, size = 0x2000, scoped, tag = 'output window, operand 0']
    %6 = vsyncpa [#allocation3], 0
    %s7 = scalar_lea.sflag [#allocation3], 1
    %8 = vsyncpa %s7, 0
    %9 = vsyncpa [#allocation4], 0
    %s10 = scalar_lea.sflag [#allocation4], 1
    %11 = vsyncpa %s10, 0
    loop: start=0, step=1, limit=4
    $region2: #{gated_silu.1} parent=1 // loop_pre_header
      _
    $region3: #{gated_silu.1} parent=1 // loop_header
      %s13 = sphi 0, %s17
      %p14 = scmp.ge.s32.totalorder %s13, 4
      %s23 = sphi 0, %s25
      %s26 = sphi 0, %s23
      %s27 = sphi 0, %s26
      %s43 = sphi 0, %s27
      %s49 = sphi 0, %s51
      %s52 = sphi 0, %s49
      %s53 = sphi 0, %s52
      %s69 = sphi 0, %s53
    $region4: #{gated_silu.1} parent=1 // loop_header_branch
      %16 = sbr.rel (%p14) target = $region8
    $region5: #{gated_silu.1} parent=1 // loop_body
      %s18 = ssub.s32 %s13, 1
      %s19 = ssub.s32 %s13, 2
      %s20 = sadd.s32 %s13, 1
      %s21 = ssub.s32 %s13, %s20
      %p22 = scmp.eq.s32.totalorder %s21, 0
      %s24 = sadd.s32 %s23, 1
      %s25 = scalar_select %p22, %s23, %s24
      %p28 = pneg %p22
      %p29 = scmp.eq.s32.totalorder %s13, 1
      %p30 = por %p28, %p29
      %p31 = scmp.ne.s32.totalorder %s23, %s26
      %p32 = scmp.eq.s32.totalorder %s13, 0
      %p33 = por %p31, %p32
      %p34 = scmp.ne.s32.totalorder %s23, %s26
      %p35 = scmp.eq.s32.totalorder %s18, 1
      %p36 = por %p34, %p35
      %p37 = scmp.ne.s32.totalorder %s26, %s27
      %p38 = scmp.eq.s32.totalorder %s18, 0
      %p39 = por %p37, %p38
      %p40 = scmp.ne.s32.totalorder %s26, %s27
      %p41 = scmp.eq.s32.totalorder %s19, 1
      %p42 = por %p40, %p41
      %p44 = scmp.ne.s32.totalorder %s27, %s43
      %p45 = scmp.eq.s32.totalorder %s19, 0
      %p46 = por %p44, %p45
      %s47 = ssub.s32 %s13, %s20
      %p48 = scmp.eq.s32.totalorder %s47, 0
      %s50 = sadd.s32 %s49, 1
      %s51 = scalar_select %p48, %s49, %s50
      %p54 = pneg %p48
      %p55 = scmp.eq.s32.totalorder %s13, 1
      %p56 = por %p54, %p55
      %p57 = scmp.ne.s32.totalorder %s49, %s52
      %p58 = scmp.eq.s32.totalorder %s13, 0
      %p59 = por %p57, %p58
      %p60 = scmp.ne.s32.totalorder %s49, %s52
      %p61 = scmp.eq.s32.totalorder %s18, 1
      %p62 = por %p60, %p61
      %p63 = scmp.ne.s32.totalorder %s52, %s53
      %p64 = scmp.eq.s32.totalorder %s18, 0
      %p65 = por %p63, %p64
      %p66 = scmp.ne.s32.totalorder %s52, %s53
      %p67 = scmp.eq.s32.totalorder %s19, 1
      %p68 = por %p66, %p67
      %p70 = scmp.ne.s32.totalorder %s53, %s69
      %p71 = scmp.eq.s32.totalorder %s19, 0
      %p72 = por %p70, %p71
      %p73 = scmp.le.s32.totalorder 1, %s13
      %p74 = scmp.lt.s32.totalorder %s13, 3
      %p75 = pnand %p73, %p74
      %p76 = pneg %p75
      // Predicated region
      $region9: #{gated_silu.1} parent=5 // pred_check
        _
      $region10: #{gated_silu.1} parent=5 // pred_check_branch
        %78 = sbr.rel (%p75) target = $region12
      $region11: #{gated_silu.1} parent=5 // pred_region
        %s79 = ssub.s32 %s13, 1
      $region12: #{gated_silu.1} parent=5 // pred_fallthru
        _
      %p80 = scmp.lt.s32.totalorder %s13, 2
      // Predicated region
      $region13: #{gated_silu.1} parent=5 // pred_check
        %p81 = pneg %p80
      $region14: #{gated_silu.1} parent=5 // pred_check_branch
        %83 = sbr.rel (%p81) target = $region16
      $region15: #{gated_silu.1} parent=5 // pred_region
        // Predicated region
        $region17: #{gated_silu.1} parent=15 // pred_check
          %p84 = pneg %p33
        $region18: #{gated_silu.1} parent=15 // pred_check_branch
          %86 = sbr.rel (%p84) target = $region20
        $region19: #{gated_silu.1} parent=15 // pred_region
          %s87 = sand.u32 %s23, 1
          %s88 = scalar_lea.sflag [#allocation3], %s87
          %s89 = sand.u32 %s23, 1
          %s90 = smul.addr %s89, 8
          %s91 = scalar_lea.vmem [#allocation2], %s90
          %s93 = ssub.s32 128, 128
          %94 = vsyncadd %s88, %s93
          %s95 = smul.addr %s13, 128
          %s96 = scalar_lea.hbm %s0, %s95
          %s98 = sshll.u32 %s91, 4
          %s99 = int_to_ptr.vmem [resolvable:$true] %s98
          %101 = dma.hbm_to_vmem [thread:$0]  %s96, 128, %s99, %s88
        $region20: #{gated_silu.1} parent=15 // pred_fallthru
          _
      $region16: #{gated_silu.1} parent=5 // pred_fallthru
        _
      %p102 = scmp.le.s32.totalorder 1, %s13
      %p103 = scmp.lt.s32.totalorder %s13, 3
      %p104 = pnand %p102, %p103
      %p105 = pneg %p104
      // Predicated region
      $region21: #{gated_silu.1} parent=5 // pred_check
        _
      $region22: #{gated_silu.1} parent=5 // pred_check_branch
        %107 = sbr.rel (%p104) target = $region24
      $region23: #{gated_silu.1} parent=5 // pred_region
        %s108 = ssub.s32 %s13, 1
        %s109 = sand.u32 %s26, 1
        %s110 = scalar_lea.sflag [#allocation3], %s109
        %s111 = sand.u32 %s26, 1
        %s112 = smul.addr %s111, 8
        %s113 = scalar_lea.vmem [#allocation2], %s112
        // Predicated region
        $region25: #{gated_silu.1} parent=23 // pred_check
          %p114 = pneg %p39
        $region26: #{gated_silu.1} parent=23 // pred_check_branch
          %116 = sbr.rel (%p114) target = $region28
        $region27: #{gated_silu.1} parent=23 // pred_region
          %117 = dma.done %s110, 128
        $region28: #{gated_silu.1} parent=23 // pred_fallthru
          _
        %s118 = sand.u32 %s26, 1
        %s119 = scalar_lea.sflag [#allocation3], %s118
        %s120 = sand.u32 %s26, 1
        %s121 = smul.addr %s120, 8
        %s122 = scalar_lea.vmem [#allocation2], %s121
        %p123 = pneg %p39
        %p124 = pneg %p36
        %p125 = pneg %p65
        %p126 = pneg %p62
        %s127 = sand.u32 %s52, 1
        %s128 = scalar_lea.sflag [#allocation4], %s127
        %s129 = sand.u32 %s52, 1
        %s130 = smul.addr %s129, 8
        %s131 = scalar_lea.vmem [#allocation5], %s130
        %v132 = vld [vmem:[%s113] sm:$0xff]
        %v133 = vxor.u32 %v132, 2147483648
        %v134 = vmul.f32 %v133, 1.442695
        %v135 = vpow.pop %v134
        %v136 = vadd.f32 %v135, 1.0
        %v137 = vrcp.pop %v136
        %v138 = vmul.f32 1.0, %v137
        %v139 = vmul.f32 %v132, %v138
        %141 = vrot.lane.b32.xlu0 %v139, 96
        %v142 = vpop.permute.xlu0 %141
        %v144 = vmul.f32 %v132, %v142
        %vm145 = vcmask 261120
        %146 = vst.msk [vmem:[%s131] sm:$0xff] %vm145, %v144
        %s147 = sand.u32 %s52, 1
        %s148 = scalar_lea.sflag [#allocation4], %s147
        %s149 = sand.u32 %s52, 1
        %s150 = smul.addr %s149, 8
        %s151 = scalar_lea.vmem [#allocation5], %s150
        // Predicated region
        $region29: #{gated_silu.1} parent=23 // pred_check
          %p152 = pneg %p62
        $region30: #{gated_silu.1} parent=23 // pred_check_branch
          %154 = sbr.rel (%p152) target = $region32
        $region31: #{gated_silu.1} parent=23 // pred_region
          %s156 = ssub.s32 128, 128
          %157 = vsyncadd %s148, %s156
          %s158 = smul.addr %s18, 128
          %s159 = scalar_lea.hbm %s1, %s158
          %s161 = sshll.u32 %s151, 4
          %s162 = int_to_ptr.vmem [resolvable:$true] %s161
          %164 = dma.vmem_to_hbm [thread:$0]  %s162, 128, %s159, %s148
        $region32: #{gated_silu.1} parent=23 // pred_fallthru
          _
      $region24: #{gated_silu.1} parent=5 // pred_fallthru
        _
      %p165 = scmp.le.s32.totalorder 2, %s13
      // Predicated region
      $region33: #{gated_silu.1} parent=5 // pred_check
        %p166 = pneg %p165
      $region34: #{gated_silu.1} parent=5 // pred_check_branch
        %168 = sbr.rel (%p166) target = $region36
      $region35: #{gated_silu.1} parent=5 // pred_region
        %s169 = ssub.s32 %s13, 2
        // Predicated region
        $region37: #{gated_silu.1} parent=35 // pred_check
          %p170 = pneg %p68
        $region38: #{gated_silu.1} parent=35 // pred_check_branch
          %172 = sbr.rel (%p170) target = $region40
        $region39: #{gated_silu.1} parent=35 // pred_region
          %s173 = sand.u32 %s53, 1
          %s174 = scalar_lea.sflag [#allocation4], %s173
          %s175 = sand.u32 %s53, 1
          %s176 = smul.addr %s175, 8
          %s177 = scalar_lea.vmem [#allocation5], %s176
          %178 = dma.done %s174, 128
        $region40: #{gated_silu.1} parent=35 // pred_fallthru
          _
      $region36: #{gated_silu.1} parent=5 // pred_fallthru
        _
    $region6: #{gated_silu.1} parent=1 // loop_footer
      %s17 = sadd.s32 1, %s13
    $region7: #{gated_silu.1} parent=1 // loop_footer_branch
      %12 = sbr.rel target = $region3
    $region8: #{gated_silu.1} parent=1 // loop_exit
      _
    %179 = vsyncpa [#allocation3], 1
    %s180 = scalar_lea.sflag [#allocation3], 1
    %181 = vsyncpa %s180, 1
    %182 = vsyncpa [#allocation4], 1
    %s183 = scalar_lea.sflag [#allocation4], 1
    %184 = vsyncpa %s183, 1

</llo_original>
